<compile_context>
chip_gen: v7x
topology: tpu7x:2x2x1
jax: 0.10.0
libtpu: 0.0.40
codegen_flags: <defaults>
</compile_context>

<pallas_src>
import functools

import jax
import jax.numpy as jnp
from jax import lax
from jax.experimental import pallas as pl
from jax.experimental.pallas import tpu as pltpu


_HEAD_PAD = 128  # pad the 3-wide position head to a full lane-dense width
_MIB = 1024 * 1024


def _round_up(x, m):
    return ((x + m - 1) // m) * m


def _position_lm_kernel(x_ref, w1_ref, b1_ref, w2_ref, b2_ref, o_ref, *,
                        sub_rows):
    # x_ref : (tm, D)         x.dtype (cast to bf16 in-kernel, under the MXU)
    # w1_ref: (D, D)          bf16, W1^T (single-buffered, resident)
    # b1_ref: (1, D)          f32
    # w2_ref: (D, HEAD_PAD)   bf16, W2^T zero-padded to 128 lanes
    # b2_ref: (1, HEAD_PAD)   f32, zero-padded
    # o_ref : (tm, HEAD_PAD)  x.dtype, lane-dense output tile
    b1 = b1_ref[...]
    b2 = b2_ref[...]
    n_sub = x_ref.shape[0] // sub_rows

    def compute(r0):
        xs = x_ref[pl.ds(r0, sub_rows), :].astype(jnp.bfloat16)
        h = jnp.dot(xs, w1_ref[...], preferred_element_type=jnp.float32)
        h = jnp.maximum(h + b1, 0.0)                      # f32 bias + ReLU (VPU)
        out = jnp.dot(h.astype(jnp.bfloat16), w2_ref[...],
                      preferred_element_type=jnp.float32)
        o_ref[pl.ds(r0, sub_rows), :] = (out + b2).astype(o_ref.dtype)

    if n_sub == 1:
        compute(0)
    else:
        def body(s, carry):
            compute(pl.multiple_of(s * sub_rows, sub_rows))
            return carry
        lax.fori_loop(0, n_sub, body, 0, unroll=True)


def _const_spec(block_shape):
    """BlockSpec for a grid-invariant (resident) block; single-buffered."""
    index_map = lambda i: (0,) * len(block_shape)
    if hasattr(pl, "Buffered"):
        try:
            return pl.BlockSpec(block_shape, index_map,
                                pipeline_mode=pl.Buffered(1))
        except TypeError:
            pass  # older API without pipeline_mode; fall back to default
    return pl.BlockSpec(block_shape, index_map)


def _device_kind():
    try:
        return jax.devices()[0].device_kind.lower()
    except Exception:
        return ""


def _dimension_semantics():
    # v7x has 2 TensorCores per chip; only CORE_PARALLEL shards the grid
    # across them. On v5e/v6e plain "parallel" is equivalent to arbitrary.
    if "v7" in _device_kind() and hasattr(pltpu, "CORE_PARALLEL"):
        return (pltpu.CORE_PARALLEL,)
    return ("parallel",)


def prepare_params(w1, b1, w2, b2, *, head_pad=_HEAD_PAD,
                   matmul_dtype=jnp.bfloat16):
    """Convert torch-layout nn.Linear params to kernel layout, once at load."""
    d_model = w1.shape[1]
    n_out = w2.shape[0]
    assert n_out <= head_pad

    w1_t = jnp.asarray(w1, jnp.float32).T.astype(matmul_dtype)       # (D, D)
    b1_r = jnp.asarray(b1, jnp.float32).reshape(1, d_model)          # (1, D)

    w2_t = jnp.zeros((d_model, head_pad), matmul_dtype)
    w2_t = w2_t.at[:, :n_out].set(
        jnp.asarray(w2, jnp.float32).T.astype(matmul_dtype))         # (D, 128)
    b2_r = jnp.zeros((1, head_pad), jnp.float32)
    b2_r = b2_r.at[0, :n_out].set(jnp.asarray(b2, jnp.float32))      # (1, 128)
    return w1_t, b1_r, w2_t, b2_r, n_out


def position_lm(x, w1_t, b1_r, w2_t, b2_r, n_out=3, *, tm=1024, sub_rows=256):
    """x: [B, S, D]; params already in kernel layout (see prepare_params)."""
    B, S, D = x.shape
    M = B * S
    head_pad = w2_t.shape[1]

    # Big, MXU-aligned row tile for real workloads; shrunk (to a multiple of 8
    # sublanes) for tiny inputs so the smoke test needs no padding.
    tm = min(tm, _round_up(M, 8))
    grid_m = pl.cdiv(M, tm)
    m_pad = grid_m * tm

    # In-kernel sub-tiling of the rows so the f32 `h` intermediate stays small.
    if tm % sub_rows != 0:
        sub_rows = tm

    x2d = x.reshape(M, D)
    if m_pad != M:
        # Padded rows produce ReLU(b1)@W2 + b2 garbage; they are sliced off
        # below and never aliased or re-read.
        x2d = jnp.pad(x2d, ((0, m_pad - M), (0, 0)))

    out_dtype = x.dtype
    x_bytes = x2d.dtype.itemsize
    out_bytes = jnp.dtype(out_dtype).itemsize

    weights_bytes = (w1_t.size * w1_t.dtype.itemsize
                     + b1_r.size * b1_r.dtype.itemsize
                     + w2_t.size * w2_t.dtype.itemsize
                     + b2_r.size * b2_r.dtype.itemsize)

    # VMEM budget: double-buffered x / out tiles, single-buffered constants,
    # in-flight f32 h sub-tile (+ bf16 copy), plus headroom.
    vmem_budget = (2 * tm * D * x_bytes
                   + 2 * tm * head_pad * out_bytes
                   + weights_bytes
                   + 2 * sub_rows * D * 4
                   + 16 * _MIB)
    vmem_cap = 56 * _MIB if "v7" in _device_kind() else 112 * _MIB
    vmem_limit = int(max(32 * _MIB, min(vmem_budget, vmem_cap)))

    cost = pl.CostEstimate(
        flops=2 * m_pad * D * (D + head_pad),
        transcendentals=0,
        bytes_accessed=(m_pad * D * x_bytes
                        + weights_bytes
                        + m_pad * head_pad * out_bytes),
    )

    kernel = functools.partial(_position_lm_kernel, sub_rows=sub_rows)

    out = pl.pallas_call(
        kernel,
        out_shape=jax.ShapeDtypeStruct((m_pad, head_pad), out_dtype),
        grid_spec=pltpu.PrefetchScalarGridSpec(
            num_scalar_prefetch=0,
            grid=(grid_m,),
            in_specs=[
                pl.BlockSpec((tm, D), lambda i: (i, 0)),   # x tile (pipelined)
                _const_spec((D, D)),                       # W1^T (resident)
                _const_spec((1, D)),                       # b1
                _const_spec((D, head_pad)),                # W2^T (padded)
                _const_spec((1, head_pad)),                # b2  (padded)
            ],
            out_specs=pl.BlockSpec((tm, head_pad), lambda i: (i, 0)),
        ),
        compiler_params=pltpu.CompilerParams(
            dimension_semantics=_dimension_semantics(),
            vmem_limit_bytes=vmem_limit,
        ),
        cost_estimate=cost,
    )(x2d, w1_t, b1_r, w2_t, b2_r)

    return out[:M, :n_out].reshape(B, S, n_out)


def _reference(x, w1, b1, w2, b2):
    h = jnp.maximum(jnp.einsum("bsd,ed->bse", x, w1) + b1, 0.0)
    return jnp.einsum("bsd,ed->bse", h, w2) + b2


if __name__ == "__main__":
    key = jax.random.PRNGKey(0)
    B, S, D = 2, 8, 32  # batch=2, seq=8, d_model=32

    k_x, k_w1, k_b1, k_w2, k_b2 = jax.random.split(key, 5)
    x = jax.random.normal(k_x, (B, S, D), dtype=jnp.float32)

    # Deterministic parameter init (same shapes as nn.Linear in the module).
    bound = 1.0 / (D ** 0.5)
    w1 = jax.random.uniform(k_w1, (D, D), jnp.float32, -bound, bound)
    b1 = jax.random.uniform(k_b1, (D,), jnp.float32, -bound, bound)
    w2 = jax.random.uniform(k_w2, (3, D), jnp.float32, -bound, bound)
    b2 = jax.random.uniform(k_b2, (3,), jnp.float32, -bound, bound)

    # One-time conversion to kernel layout (transpose / pad / bf16).
    w1_t, b1_r, w2_t, b2_r, n_out = prepare_params(w1, b1, w2, b2)

    out = position_lm(x, w1_t, b1_r, w2_t, b2_r, n_out)
    out = jax.block_until_ready(out)

    ref = _reference(x, w1, b1, w2, b2)
    assert out.shape == (B, S, 3)
    assert out.dtype == x.dtype
    # bf16 MXU inputs with f32 accumulation vs an f32 reference: use a
    # bf16-appropriate tolerance (error grows mildly with d_model).
    assert jnp.allclose(out, ref, atol=3e-2, rtol=3e-2), "mismatch vs reference"

    print("KERNEL_OK")
</pallas_src>

<mosaic_0001>
module attributes {stable_mosaic.version = 11 : i64} {
  func.func @_position_lm_kernel(%arg0: i32, %arg1: memref<16x32xf32, #tpu.memory_space<vmem>>, %arg2: memref<32x32xbf16, #tpu.memory_space<vmem>>, %arg3: memref<1x32xf32, #tpu.memory_space<vmem>>, %arg4: memref<32x128xbf16, #tpu.memory_space<vmem>>, %arg5: memref<1x128xf32, #tpu.memory_space<vmem>>, %arg6: memref<16x128xf32, #tpu.memory_space<vmem>>) attributes {dimension_semantics = [#tpu.dimension_semantics<parallel>], iteration_bounds = array<i64: 1>, scalar_prefetch = 0 : i64, scratch_operands = 0 : i64, tpu.core_type = #tpu.core_type<tc>, window_params = [{transform_indices = @transform_0, window_bounds = array<i64: 16, 32>}, {pipeline_mode = #tpu.pipeline_mode<synchronous>, transform_indices = @transform_1, window_bounds = array<i64: 32, 32>}, {pipeline_mode = #tpu.pipeline_mode<synchronous>, transform_indices = @transform_2, window_bounds = array<i64: 1, 32>}, {pipeline_mode = #tpu.pipeline_mode<synchronous>, transform_indices = @transform_3, window_bounds = array<i64: 32, 128>}, {pipeline_mode = #tpu.pipeline_mode<synchronous>, transform_indices = @transform_4, window_bounds = array<i64: 1, 128>}, {transform_indices = @transform_5, window_bounds = array<i64: 16, 128>}]} {
    %c0 = arith.constant 0 : index
    %c0_0 = arith.constant 0 : index
    %0 = vector.load %arg3[%c0, %c0_0] : memref<1x32xf32, #tpu.memory_space<vmem>>, vector<1x32xf32>
    %c0_1 = arith.constant 0 : index
    %c0_2 = arith.constant 0 : index
    %1 = vector.load %arg5[%c0_1, %c0_2] : memref<1x128xf32, #tpu.memory_space<vmem>>, vector<1x128xf32>
    %c0_3 = arith.constant 0 : index
    %c0_4 = arith.constant 0 : index
    %2 = vector.load %arg1[%c0_3, %c0_4] : memref<16x32xf32, #tpu.memory_space<vmem>>, vector<16x32xf32>
    %3 = arith.truncf %2 : vector<16x32xf32> to vector<16x32xbf16>
    %c0_5 = arith.constant 0 : index
    %c0_6 = arith.constant 0 : index
    %4 = vector.load %arg2[%c0_5, %c0_6] : memref<32x32xbf16, #tpu.memory_space<vmem>>, vector<32x32xbf16>
    %cst = arith.constant dense<0.000000e+00> : vector<16x32xf32>
    %5 = tpu.matmul %3, %4, %cst {dimension_numbers = #tpu.dot_dimension_numbers<[1], [0], [0], [1], [0, 0, 1, 1], [], []>} : vector<16x32xbf16>, vector<32x32xbf16>, vector<16x32xf32> -> vector<16x32xf32>
    %6 = vector.broadcast %0 : vector<1x32xf32> to vector<16x32xf32>
    %7 = arith.addf %5, %6 : vector<16x32xf32>
    %cst_7 = arith.constant 0.000000e+00 : f32
    %8 = vector.broadcast %cst_7 : f32 to vector<16x32xf32>
    %9 = arith.maximumf %7, %8 : vector<16x32xf32>
    %10 = arith.truncf %9 : vector<16x32xf32> to vector<16x32xbf16>
    %c0_8 = arith.constant 0 : index
    %c0_9 = arith.constant 0 : index
    %11 = vector.load %arg4[%c0_8, %c0_9] : memref<32x128xbf16, #tpu.memory_space<vmem>>, vector<32x128xbf16>
    %cst_10 = arith.constant dense<0.000000e+00> : vector<16x128xf32>
    %12 = tpu.matmul %10, %11, %cst_10 {dimension_numbers = #tpu.dot_dimension_numbers<[1], [0], [0], [1], [0, 0, 1, 1], [], []>} : vector<16x32xbf16>, vector<32x128xbf16>, vector<16x128xf32> -> vector<16x128xf32>
    %13 = vector.broadcast %1 : vector<1x128xf32> to vector<16x128xf32>
    %14 = arith.addf %12, %13 : vector<16x128xf32>
    %c0_11 = arith.constant 0 : index
    %c0_12 = arith.constant 0 : index
    %15 = vector.load %arg6[%c0_11, %c0_12] : memref<16x128xf32, #tpu.memory_space<vmem>>, vector<16x128xf32>
    tpu.vector_store %arg6[%c0_11, %c0_12], %14 {strides = array<i32>} : memref<16x128xf32, #tpu.memory_space<vmem>>, vector<16x128xf32>,
    return
  }
  func.func @transform_0(%arg0: i32) -> (i32, i32) {
    %c0_i32 = arith.constant 0 : i32
    %c0_i32_0 = arith.constant 0 : i32
    return %arg0, %c0_i32 : i32, i32
  }
  func.func @transform_1(%arg0: i32) -> (i32, i32) {
    %c0_i32 = arith.constant 0 : i32
    %c0_i32_0 = arith.constant 0 : i32
    %c0_i32_1 = arith.constant 0 : i32
    return %c0_i32, %c0_i32_0 : i32, i32
  }
  func.func @transform_2(%arg0: i32) -> (i32, i32) {
    %c0_i32 = arith.constant 0 : i32
    %c0_i32_0 = arith.constant 0 : i32
    %c0_i32_1 = arith.constant 0 : i32
    return %c0_i32, %c0_i32_0 : i32, i32
  }
  func.func @transform_3(%arg0: i32) -> (i32, i32) {
    %c0_i32 = arith.constant 0 : i32
    %c0_i32_0 = arith.constant 0 : i32
    %c0_i32_1 = arith.constant 0 : i32
    return %c0_i32, %c0_i32_0 : i32, i32
  }
  func.func @transform_4(%arg0: i32) -> (i32, i32) {
    %c0_i32 = arith.constant 0 : i32
    %c0_i32_0 = arith.constant 0 : i32
    %c0_i32_1 = arith.constant 0 : i32
    return %c0_i32, %c0_i32_0 : i32, i32
  }
  func.func @transform_5(%arg0: i32) -> (i32, i32) {
    %c0_i32 = arith.constant 0 : i32
    %c0_i32_0 = arith.constant 0 : i32
    return %arg0, %c0_i32 : i32, i32
  }
}

</mosaic_0001>

<llo_original>
// kernel: tpu_custom_call.1
$region0: #{tpu_custom_call.1}
  #allocation0 [shape = 'u32[]', space=smem, size = 0x4, offset = 0x4, fixed_abs, tag = 'smem constant byte address 0x4 - core index']
  #allocation1 [shape = 'u32[144,128]{1,0:T(1,128)}', space=vmem, size = 0x12000, scoped, tag = 'internal scratch']
  %s0 = inlined_call_operand.hbm [shape: f32[16,32], index: 0, kind: input, shape index: {}]
  %s1 = inlined_call_operand.hbm [shape: bf16[32,32], index: 1, kind: input, shape index: {}]
  %s2 = inlined_call_operand.vmem [shape: f32[1,32], index: 2, kind: input, shape index: {}]
  %s3 = inlined_call_operand.hbm [shape: bf16[32,128], index: 3, kind: input, shape index: {}]
  %s4 = inlined_call_operand.vmem [shape: f32[1,128], index: 4, kind: input, shape index: {}]
  %s5 = inlined_call_operand.hbm [shape: f32[16,128], index: 5, kind: output, shape index: {}]
  %s6 = sld [smem:[#allocation0]]
  $region42: #{tpu_custom_call.1} parent=0
    _
  %s8 = ssub.s32 1, %s6
  %s9 = scalar_select 0, %s8, %s6
  $region1: #{tpu_custom_call.1} parent=0
    #allocation2 [shape = 'u8[8192]{0}', space=vmem, size = 0x2000, scoped, tag = 'input window, operand 0, single buffered']
    #allocation3 [shape = 's32[1]{0}', space=sflag, size = 0x4, scoped, tag = 'scoped memory for tpu_custom_call.1']
    #allocation4 [shape = 's32[1]{0}', space=sflag, size = 0x4, scoped, tag = 'scoped memory for tpu_custom_call.1']
    #allocation5 [shape = 'u8[8192]{0}', space=vmem, size = 0x2000, scoped, tag = 'input window, operand 1, single buffered']
    #allocation6 [shape = 's32[1]{0}', space=sflag, size = 0x4, scoped, tag = 'scoped memory for tpu_custom_call.1']
    #allocation7 [shape = 'u8[8192]{0}', space=vmem, size = 0x2000, scoped, tag = 'input window, operand 3, single buffered']
    #allocation8 [shape = 'u8[8192]{0}', space=vmem, size = 0x2000, scoped, tag = 'output window, operand 0, single buffered']
    %10 = vsyncpa [#allocation3], 0
    %11 = vsyncpa [#allocation6], 0
    %12 = vsyncpa [#allocation4], 0
    // Predicated region
    $region2: #{tpu_custom_call.1} parent=1 // pred_check
      _
    $region3: #{tpu_custom_call.1} parent=1 // pred_check_branch
      %14 = sbr.rel (0) target = $region5
    $region4: #{tpu_custom_call.1} parent=1 // pred_region
      %s16 = ssub.s32 256, 256
      %17 = vsyncadd [#allocation3], %s16
      %s18 = sshll.u32 [#allocation2], 4
      %s19 = int_to_ptr.vmem [resolvable:$true] %s18
      %24 = dma.hbm_to_vmem [thread:$0]  %s0, 256, %s19, [#allocation3], 128, 128, 8
    $region5: #{tpu_custom_call.1} parent=1 // pred_fallthru
      _
    // Predicated region
    $region6: #{tpu_custom_call.1} parent=1 // pred_check
      _
    $region7: #{tpu_custom_call.1} parent=1 // pred_check_branch
      %26 = sbr.rel (0) target = $region9
    $region8: #{tpu_custom_call.1} parent=1 // pred_region
      %s28 = ssub.s32 256, 256
      %29 = vsyncadd [#allocation6], %s28
      %s30 = sshll.u32 [#allocation5], 4
      %s31 = int_to_ptr.vmem [resolvable:$true] %s30
      %36 = dma.hbm_to_vmem [thread:$0]  %s1, 256, %s31, [#allocation6], 64, 64, 4
    $region9: #{tpu_custom_call.1} parent=1 // pred_fallthru
      _
    // Predicated region
    $region10: #{tpu_custom_call.1} parent=1 // pred_check
      _
    $region11: #{tpu_custom_call.1} parent=1 // pred_check_branch
      %38 = sbr.rel (0) target = $region13
    $region12: #{tpu_custom_call.1} parent=1 // pred_region
      _
    $region13: #{tpu_custom_call.1} parent=1 // pred_fallthru
      _
    // Predicated region
    $region14: #{tpu_custom_call.1} parent=1 // pred_check
      _
    $region15: #{tpu_custom_call.1} parent=1 // pred_check_branch
      %40 = sbr.rel (0) target = $region17
    $region16: #{tpu_custom_call.1} parent=1 // pred_region
      %s42 = ssub.s32 256, 256
      %43 = vsyncadd [#allocation6], %s42
      %s44 = sshll.u32 [#allocation7], 4
      %s45 = int_to_ptr.vmem [resolvable:$true] %s44
      %50 = dma.hbm_to_vmem [thread:$0]  %s3, 256, %s45, [#allocation6], 64, 64, 4
    $region17: #{tpu_custom_call.1} parent=1 // pred_fallthru
      _
    // Predicated region
    $region18: #{tpu_custom_call.1} parent=1 // pred_check
      _
    $region19: #{tpu_custom_call.1} parent=1 // pred_check_branch
      %52 = sbr.rel (0) target = $region21
    $region20: #{tpu_custom_call.1} parent=1 // pred_region
      _
    $region21: #{tpu_custom_call.1} parent=1 // pred_fallthru
      _
    // Predicated region
    $region22: #{tpu_custom_call.1} parent=1 // pred_check
      _
    $region23: #{tpu_custom_call.1} parent=1 // pred_check_branch
      %54 = sbr.rel (0) target = $region25
    $region24: #{tpu_custom_call.1} parent=1 // pred_region
      %55 = dma.done [#allocation3], 256
    $region25: #{tpu_custom_call.1} parent=1 // pred_fallthru
      _
    // Predicated region
    $region26: #{tpu_custom_call.1} parent=1 // pred_check
      _
    $region27: #{tpu_custom_call.1} parent=1 // pred_check_branch
      %57 = sbr.rel (0) target = $region29
    $region28: #{tpu_custom_call.1} parent=1 // pred_region
      %58 = dma.done [#allocation6], 256
    $region29: #{tpu_custom_call.1} parent=1 // pred_fallthru
      _
    // Predicated region
    $region30: #{tpu_custom_call.1} parent=1 // pred_check
      _
    $region31: #{tpu_custom_call.1} parent=1 // pred_check_branch
      %60 = sbr.rel (0) target = $region33
    $region32: #{tpu_custom_call.1} parent=1 // pred_region
      %61 = dma.done [#allocation6], 256
    $region33: #{tpu_custom_call.1} parent=1 // pred_fallthru
      _
    %v63 = vld [vmem:[%s2] sm:$0x1]
    %v64 = vld [vmem:[%s4] sm:$0x1]
    %v65 = vld [vmem:[#allocation2] sm:$0xff]
    %v66 = vld [vmem:[#allocation2 + $0x8] sm:$0xff]
    %v67 = vpack.c.bf16 %v66, %v65
    %v68 = vld [vmem:[#allocation5] sm:$0xf]
    %v69 = vld [vmem:[#allocation5 + $0x4] sm:$0xf]
    %v70 = vld [vmem:[#allocation5 + $0x8] sm:$0xf]
    %v71 = vld [vmem:[#allocation5 + $0xc] sm:$0xf]
    %v73 = vlaneseq
    %v74 = vshrl.u32 %v73, 7
    %v75 = vsub.s32 0, %v74
    %v76 = vrot.slane %v63, %v75
    %v82 = vunpack.c.l.b16 %v68
    %v83 = vunpack.c.l.b16 %v69
    %v84 = vunpack.c.l.b16 %v70
    %v85 = vunpack.c.l.b16 %v71
    %v86 = vpack.c.b16 %v83, %v82
    %v87 = vpack.c.b16 %v85, %v84
    %vm90 = vcmask 261120
    %v92 = vsel %vm90, %v67, 0
    %94 = vmatprep.subr.bf16.mxu0 0
    %95 = vmatpush1.bf16.msra.mxu0 %v86
    %96 = vmatprep.subr.bf16.mxu0 0
    %97 = vmatpush1.bf16.msra.mxu0 %v87
    %98 = vmatprep.subr.bf16.mxu0 0
    %99 = vmatpush1.bf16.msra.mxu0 0
    %100 = vmatprep.subr.bf16.mxu0 0
    %101 = vmatpush1.bf16.msra.mxu0 0
    %102 = vmatprep.subr.bf16.mxu0 0
    %103 = vmatpush1.bf16.msra.mxu0 0
    %104 = vmatprep.subr.bf16.mxu0 0
    %105 = vmatpush1.bf16.msra.mxu0 0
    %106 = vmatprep.subr.bf16.mxu0 0
    %107 = vmatpush1.bf16.msra.mxu0 0
    %108 = vmatprep.subr.bf16.mxu0 0
    %109 = vmatpush1.bf16.msra.mxu0 0
    %110 = vmatprep.subr.bf16.mxu0 0
    %111 = vmatpush1.bf16.msra.mxu0 0
    %112 = vmatprep.subr.bf16.mxu0 0
    %113 = vmatpush1.bf16.msra.mxu0 0
    %114 = vmatprep.subr.bf16.mxu0 0
    %115 = vmatpush1.bf16.msra.mxu0 0
    %116 = vmatprep.subr.bf16.mxu0 0
    %117 = vmatpush1.bf16.msra.mxu0 0
    %118 = vmatprep.subr.bf16.mxu0 0
    %119 = vmatpush1.bf16.msra.mxu0 0
    %120 = vmatprep.subr.bf16.mxu0 0
    %121 = vmatpush1.bf16.msra.mxu0 0
    %122 = vmatprep.subr.bf16.mxu0 0
    %123 = vmatpush1.bf16.msra.mxu0 0
    %124 = vmatprep.subr.bf16.mxu0 0
    %125 = vmatpush1.bf16.msra.mxu0 0
    %126 = vmatprep.mubr.bf16.mxu0 0
    %127 = vmatmul.mubr.bf16.gmra.mrb[0].mxu0 %v92
    %v128 = vpop.f32.mrb[0].mxu0
    %v129 = vadd.f32 %v76, %v128
    %v130 = vpop.f32.mrb[0].mxu0
    %v131 = vpop.f32.mrb[0].mxu0
    %v132 = vadd.f32 %v76, %v131
    %v133 = vpop.f32.mrb[0].mxu0
    %134 = vdwg.mxu0
    %v135 = vmax.f32 %v129, 0.0
    %v136 = vmax.f32 %v132, 0.0
    %v137 = vpack.c.bf16 %v136, %v135
    %v138 = vld [vmem:[#allocation7] sm:$0xf]
    %v139 = vld [vmem:[#allocation7 + $0x4] sm:$0xf]
    %v140 = vld [vmem:[#allocation7 + $0x8] sm:$0xf]
    %v141 = vld [vmem:[#allocation7 + $0xc] sm:$0xf]
    %v143 = vlaneseq
    %v144 = vshrl.u32 %v143, 7
    %v145 = vsub.s32 0, %v144
    %v146 = vrot.slane %v64, %v145
    %v152 = vunpack.c.l.b16 %v138
    %v153 = vunpack.c.l.b16 %v139
    %v154 = vunpack.c.l.b16 %v140
    %v155 = vunpack.c.l.b16 %v141
    %v156 = vpack.c.b16 %v153, %v152
    %v157 = vpack.c.b16 %v155, %v154
    %v161 = vsel %vm90, %v137, 0
    %163 = vmatprep.subr.bf16.mxu0 0
    %164 = vmatpush1.bf16.msra.mxu0 %v156
    %165 = vmatprep.subr.bf16.mxu0 0
    %166 = vmatpush1.bf16.msra.mxu0 %v157
    %167 = vmatprep.subr.bf16.mxu0 0
    %168 = vmatpush1.bf16.msra.mxu0 0
    %169 = vmatprep.subr.bf16.mxu0 0
    %170 = vmatpush1.bf16.msra.mxu0 0
    %171 = vmatprep.subr.bf16.mxu0 0
    %172 = vmatpush1.bf16.msra.mxu0 0
    %173 = vmatprep.subr.bf16.mxu0 0
    %174 = vmatpush1.bf16.msra.mxu0 0
    %175 = vmatprep.subr.bf16.mxu0 0
    %176 = vmatpush1.bf16.msra.mxu0 0
    %177 = vmatprep.subr.bf16.mxu0 0
    %178 = vmatpush1.bf16.msra.mxu0 0
    %179 = vmatprep.subr.bf16.mxu0 0
    %180 = vmatpush1.bf16.msra.mxu0 0
    %181 = vmatprep.subr.bf16.mxu0 0
    %182 = vmatpush1.bf16.msra.mxu0 0
    %183 = vmatprep.subr.bf16.mxu0 0
    %184 = vmatpush1.bf16.msra.mxu0 0
    %185 = vmatprep.subr.bf16.mxu0 0
    %186 = vmatpush1.bf16.msra.mxu0 0
    %187 = vmatprep.subr.bf16.mxu0 0
    %188 = vmatpush1.bf16.msra.mxu0 0
    %189 = vmatprep.subr.bf16.mxu0 0
    %190 = vmatpush1.bf16.msra.mxu0 0
    %191 = vmatprep.subr.bf16.mxu0 0
    %192 = vmatpush1.bf16.msra.mxu0 0
    %193 = vmatprep.subr.bf16.mxu0 0
    %194 = vmatpush1.bf16.msra.mxu0 0
    %195 = vmatprep.mubr.bf16.mxu0 0
    %196 = vmatmul.mubr.bf16.gmra.mrb[0].mxu0 %v161
    %v197 = vpop.f32.mrb[0].mxu0
    %v198 = vadd.f32 %v146, %v197
    %v199 = vpop.f32.mrb[0].mxu0
    %v200 = vpop.f32.mrb[0].mxu0
    %v201 = vadd.f32 %v146, %v200
    %v202 = vpop.f32.mrb[0].mxu0
    %203 = vdwg.mxu0
    %204 = vst [vmem:[#allocation8] sm:$0xff] %v198
    %205 = vst [vmem:[#allocation8 + $0x8] sm:$0xff] %v201
    // Predicated region
    $region34: #{tpu_custom_call.1} parent=1 // pred_check
      _
    $region35: #{tpu_custom_call.1} parent=1 // pred_check_branch
      %207 = sbr.rel (0) target = $region37
    $region36: #{tpu_custom_call.1} parent=1 // pred_region
      %s209 = ssub.s32 256, 256
      %210 = vsyncadd [#allocation4], %s209
      %s211 = sshll.u32 [#allocation8], 4
      %s212 = int_to_ptr.vmem [resolvable:$true] %s211
      %217 = dma.vmem_to_hbm [thread:$0]  %s212, 256, %s5, [#allocation4], 128, 128, 8
    $region37: #{tpu_custom_call.1} parent=1 // pred_fallthru
      _
    // Predicated region
    $region38: #{tpu_custom_call.1} parent=1 // pred_check
      _
    $region39: #{tpu_custom_call.1} parent=1 // pred_check_branch
      %219 = sbr.rel (0) target = $region41
    $region40: #{tpu_custom_call.1} parent=1 // pred_region
      %220 = dma.done [#allocation4], 256
    $region41: #{tpu_custom_call.1} parent=1 // pred_fallthru
      _
    %221 = vsyncpa [#allocation3], 1
    %222 = vsyncpa [#allocation6], 1
    %223 = vsyncpa [#allocation4], 1

</llo_original>
